<compile_context>
chip_gen: v6e
topology: v6e:2x2x1
jax: 0.10.0
libtpu: 0.0.40
codegen_flags: <defaults>
</compile_context>

<pallas_src>
import functools
import math

import jax
import jax.numpy as jnp
from jax.experimental import pallas as pl
from jax.experimental.pallas import tpu as pltpu


_LN_EPS = 1e-12


def _default_vmem_limit():
    # 75% of physical VMEM (48 MiB on v7x, 96 MiB on v5e/v6e); conservative fallback.
    try:
        info = pltpu.get_tpu_info()
        cap = getattr(info, "vmem_capacity_bytes", None)
        if cap:
            return int(cap * 3 // 4)
    except Exception:
        pass
    return 48 * 1024 * 1024


_VMEM_LIMIT = _default_vmem_limit()


def _pick_tile(dim, target, multiple=8):
    """Largest multiple-of-`multiple` divisor of `dim` that is <= target (or full dim)."""
    if dim <= target:
        return dim
    start = target - target % multiple
    for t in range(start, 0, -multiple):
        if dim % t == 0:
            return t
    return dim  # fall back to the full (untiled) dimension


def _gelu_tanh(y):
    # tanh-approx GELU.
    # TODO(synk): HF 'bert-base-uncased' uses the exact erf-based GELU; tanh approx here.
    return 0.5 * y * (1.0 + jnp.tanh(0.7978845608028654 * (y + 0.044715 * y * y * y)))


# ---------------------------------------------------------------------------
# Tiled GEMM with f32 VMEM accumulator (fused QKV projection)
# ---------------------------------------------------------------------------

def _matmul_kernel(x_ref, w_ref, b_ref, o_ref, acc_ref):
    k = pl.program_id(2)

    @pl.when(k == 0)
    def _init():
        acc_ref[...] = jnp.zeros_like(acc_ref)

    # Single bf16 cast of the f32 activation tile feeding the MXU; accumulate in f32.
    acc_ref[...] += jnp.dot(x_ref[...].astype(w_ref.dtype), w_ref[...],
                            preferred_element_type=jnp.float32)

    @pl.when(k == pl.num_programs(2) - 1)
    def _finalize():
        o_ref[...] = (acc_ref[...] + b_ref[...]).astype(o_ref.dtype)


def linear(x, w, b, *, tm=256, tn=768, tk=384, out_dtype=jnp.bfloat16):
    """x @ w + b.  x:[M,K] f32, w:[K,N] bf16, b:[N] f32 -> [M,N] out_dtype."""
    M, K = x.shape
    K2, N = w.shape
    assert K == K2
    tm = _pick_tile(M, tm, 8)
    tn = _pick_tile(N, tn, 128)
    tk = _pick_tile(K, tk, 128)
    grid = (M // tm, N // tn, K // tk)

    flops = 2 * M * N * K
    bytes_accessed = int(M * K * x.dtype.itemsize + K * N * w.dtype.itemsize
                         + 4 * N + M * N * jnp.dtype(out_dtype).itemsize)

    return pl.pallas_call(
        _matmul_kernel,
        out_shape=jax.ShapeDtypeStruct((M, N), out_dtype),
        grid=grid,
        in_specs=[
            pl.BlockSpec((tm, tk), lambda i, j, k: (i, k)),
            pl.BlockSpec((tk, tn), lambda i, j, k: (k, j)),
            pl.BlockSpec((1, tn), lambda i, j, k: (0, j)),
        ],
        out_specs=pl.BlockSpec((tm, tn), lambda i, j, k: (i, j)),
        scratch_shapes=[pltpu.VMEM((tm, tn), jnp.float32)],
        compiler_params=pltpu.CompilerParams(
            dimension_semantics=("parallel", "parallel", "arbitrary"),
            vmem_limit_bytes=_VMEM_LIMIT),
        cost_estimate=pl.CostEstimate(flops=flops, transcendentals=0,
                                      bytes_accessed=bytes_accessed),
    )(x, w, b.reshape(1, N))


# ---------------------------------------------------------------------------
# Plain layer norm (embeddings only)
# ---------------------------------------------------------------------------

def _layernorm_kernel(x_ref, g_ref, b_ref, o_ref, *, eps):
    x = x_ref[...].astype(jnp.float32)
    mu = jnp.mean(x, axis=-1, keepdims=True)
    var = jnp.mean(jnp.square(x - mu), axis=-1, keepdims=True)
    xn = (x - mu) * jax.lax.rsqrt(var + eps)
    o_ref[...] = (xn * g_ref[...] + b_ref[...]).astype(o_ref.dtype)


def layer_norm(x, g, b, *, eps=_LN_EPS, tm=512, out_dtype=jnp.float32):
    M, H = x.shape
    tm = _pick_tile(M, tm, 8)
    return pl.pallas_call(
        functools.partial(_layernorm_kernel, eps=eps),
        out_shape=jax.ShapeDtypeStruct((M, H), out_dtype),
        grid=(M // tm,),
        in_specs=[
            pl.BlockSpec((tm, H), lambda i: (i, 0)),
            pl.BlockSpec((1, H), lambda i: (0, 0)),
            pl.BlockSpec((1, H), lambda i: (0, 0)),
        ],
        out_specs=pl.BlockSpec((tm, H), lambda i: (i, 0)),
        compiler_params=pltpu.CompilerParams(
            dimension_semantics=("parallel",), vmem_limit_bytes=_VMEM_LIMIT),
    )(x, g.reshape(1, H), b.reshape(1, H))


# ---------------------------------------------------------------------------
# Multi-head attention: grid over (batch, head, query-tile); head split done
# entirely by BlockSpec index_maps on head-major [B, NH, S, Dh] tensors.
# ---------------------------------------------------------------------------

def _attn_kernel(q_ref, k_ref, v_ref, m_ref, o_ref, *, scale):
    q = q_ref[0, 0]                       # [tq, Dh] bf16
    k = k_ref[0, 0]                       # [S,  Dh] bf16
    v = v_ref[0, 0]                       # [S,  Dh] bf16
    m = m_ref[0]                          # [1,  S ] f32 additive mask

    # q @ k^T without an explicit transpose (contract the Dh dims) -> [tq, S] f32.
    s = jax.lax.dot_general(q, k, (((1,), (1,)), ((), ())),
                            preferred_element_type=jnp.float32)
    s = s * scale + m
    s = s - jnp.max(s, axis=-1, keepdims=True)
    p = jnp.exp(s)
    p = p / jnp.sum(p, axis=-1, keepdims=True)          # exact softmax denominator
    o_ref[0, 0] = jnp.dot(p.astype(v.dtype), v,
                          preferred_element_type=jnp.float32).astype(o_ref.dtype)


def attention(q, k, v, mask_add, scale, *, tq=256, out_dtype=jnp.bfloat16):
    """q/k/v:[B,NH,S,Dh] bf16, mask_add:[B,1,S] f32 -> context [B,NH,S,Dh] out_dtype."""
    B, NH, S, Dh = q.shape
    tq = _pick_tile(S, tq, 8)
    grid = (B, NH, S // tq)
    return pl.pallas_call(
        functools.partial(_attn_kernel, scale=scale),
        out_shape=jax.ShapeDtypeStruct((B, NH, S, Dh), out_dtype),
        grid=grid,
        in_specs=[
            pl.BlockSpec((1, 1, tq, Dh), lambda b, h, qi: (b, h, qi, 0)),
            pl.BlockSpec((1, 1, S, Dh), lambda b, h, qi: (b, h, 0, 0)),
            pl.BlockSpec((1, 1, S, Dh), lambda b, h, qi: (b, h, 0, 0)),
            pl.BlockSpec((1, 1, S), lambda b, h, qi: (b, 0, 0)),
        ],
        out_specs=pl.BlockSpec((1, 1, tq, Dh), lambda b, h, qi: (b, h, qi, 0)),
        compiler_params=pltpu.CompilerParams(
            dimension_semantics=("parallel", "parallel", "parallel"),
            vmem_limit_bytes=_VMEM_LIMIT),
        cost_estimate=pl.CostEstimate(
            flops=int(4 * B * NH * S * S * Dh),
            transcendentals=int(B * NH * S * S),
            bytes_accessed=int(8 * B * NH * S * Dh + 4 * B * S)),
    )(q, k, v, mask_add)


# ---------------------------------------------------------------------------
# Fused: attention output projection + bias + residual + layer norm
# ---------------------------------------------------------------------------

def _proj_add_ln_kernel(ctx_ref, w_ref, b_ref, res_ref, g_ref, beta_ref, o_ref, *, eps):
    y = jnp.dot(ctx_ref[...], w_ref[...], preferred_element_type=jnp.float32)
    y = y + b_ref[...] + res_ref[...]                     # residual add in f32
    mu = jnp.mean(y, axis=-1, keepdims=True)
    var = jnp.mean(jnp.square(y - mu), axis=-1, keepdims=True)
    yn = (y - mu) * jax.lax.rsqrt(var + eps)
    o_ref[...] = (yn * g_ref[...] + beta_ref[...]).astype(o_ref.dtype)


def proj_add_layer_norm(ctx, w, b, residual, g, beta, *, eps=_LN_EPS, tm=512,
                        out_dtype=jnp.float32):
    M, H = ctx.shape
    N = w.shape[1]
    tm = _pick_tile(M, tm, 8)
    return pl.pallas_call(
        functools.partial(_proj_add_ln_kernel, eps=eps),
        out_shape=jax.ShapeDtypeStruct((M, N), out_dtype),
        grid=(M // tm,),
        in_specs=[
            pl.BlockSpec((tm, H), lambda i: (i, 0)),
            pl.BlockSpec((H, N), lambda i: (0, 0)),   # weight resident across grid
            pl.BlockSpec((1, N), lambda i: (0, 0)),
            pl.BlockSpec((tm, N), lambda i: (i, 0)),
            pl.BlockSpec((1, N), lambda i: (0, 0)),
            pl.BlockSpec((1, N), lambda i: (0, 0)),
        ],
        out_specs=pl.BlockSpec((tm, N), lambda i: (i, 0)),
        compiler_params=pltpu.CompilerParams(
            dimension_semantics=("parallel",), vmem_limit_bytes=_VMEM_LIMIT),
        cost_estimate=pl.CostEstimate(
            flops=int(2 * M * H * N), transcendentals=0,
            bytes_accessed=int(2 * M * H + 2 * H * N + 8 * M * N)),
    )(ctx, w, b.reshape(1, N), residual, g.reshape(1, N), beta.reshape(1, N))


# ---------------------------------------------------------------------------
# Fused FFN block: up-proj + bias + GELU + down-proj + bias + residual + layer norm.
# Intermediate dimension is processed in `chunk`-wide slices (bounded live range).
# ---------------------------------------------------------------------------

def _ffn_kernel(x_ref, wi_ref, bi_ref, wo_ref, bo_ref, g_ref, beta_ref, o_ref,
                acc_ref, *, eps, chunk):
    x32 = x_ref[...]                              # [tm, H] f32 (residual stream)
    xb = x32.astype(wi_ref.dtype)                 # single bf16 cast for the MXU
    n_chunks = wi_ref.shape[1] // chunk

    acc_ref[...] = jnp.zeros_like(acc_ref)

    def body(c, carry):
        off = pl.multiple_of(c * chunk, chunk)
        wi_c = wi_ref[:, pl.ds(off, chunk)]       # [H, chunk] bf16
        bi_c = bi_ref[:, pl.ds(off, chunk)]       # [1, chunk] f32
        wo_c = wo_ref[pl.ds(off, chunk), :]       # [chunk, H] bf16
        inter = jnp.dot(xb, wi_c, preferred_element_type=jnp.float32)
        inter = _gelu_tanh(inter + bi_c)
        acc_ref[...] += jnp.dot(inter.astype(wo_c.dtype), wo_c,
                                preferred_element_type=jnp.float32)
        return carry

    jax.lax.fori_loop(0, n_chunks, body, 0)

    y = acc_ref[...] + bo_ref[...] + x32                  # residual add in f32
    mu = jnp.mean(y, axis=-1, keepdims=True)
    var = jnp.mean(jnp.square(y - mu), axis=-1, keepdims=True)
    yn = (y - mu) * jax.lax.rsqrt(var + eps)
    o_ref[...] = (yn * g_ref[...] + beta_ref[...]).astype(o_ref.dtype)


def ffn_add_layer_norm(x, wi, bi, wo, bo, g, beta, *, eps=_LN_EPS, tm=512,
                       chunk=512, out_dtype=jnp.float32):
    M, H = x.shape
    I = wi.shape[1]
    tm = _pick_tile(M, tm, 8)
    chunk = _pick_tile(I, chunk, 128)
    return pl.pallas_call(
        functools.partial(_ffn_kernel, eps=eps, chunk=chunk),
        out_shape=jax.ShapeDtypeStruct((M, H), out_dtype),
        grid=(M // tm,),
        in_specs=[
            pl.BlockSpec((tm, H), lambda i: (i, 0)),
            pl.BlockSpec((H, I), lambda i: (0, 0)),   # weights resident across grid
            pl.BlockSpec((1, I), lambda i: (0, 0)),
            pl.BlockSpec((I, H), lambda i: (0, 0)),
            pl.BlockSpec((1, H), lambda i: (0, 0)),
            pl.BlockSpec((1, H), lambda i: (0, 0)),
            pl.BlockSpec((1, H), lambda i: (0, 0)),
        ],
        out_specs=pl.BlockSpec((tm, H), lambda i: (i, 0)),
        scratch_shapes=[pltpu.VMEM((tm, H), jnp.float32)],
        compiler_params=pltpu.CompilerParams(
            dimension_semantics=("parallel",), vmem_limit_bytes=_VMEM_LIMIT),
        cost_estimate=pl.CostEstimate(
            flops=int(4 * M * H * I), transcendentals=int(M * I),
            bytes_accessed=int(8 * M * H + 4 * H * I)),
    )(x, wi, bi.reshape(1, I), wo, bo.reshape(1, H),
      g.reshape(1, H), beta.reshape(1, H))


# ---------------------------------------------------------------------------
# Synthetic BERT parameters + forward pass
# ---------------------------------------------------------------------------

def init_params(key, vocab_size, hidden, n_layers, intermediate, max_pos, type_vocab=2):
    def init(k, shape, dtype=jnp.bfloat16):
        return (0.02 * jax.random.normal(k, shape, jnp.float32)).astype(dtype)

    keys = jax.random.split(key, 3 + n_layers)
    params = {
        "word_emb": init(keys[0], (vocab_size, hidden), jnp.float32),
        "pos_emb": init(keys[1], (max_pos, hidden), jnp.float32),
        "type_emb": init(keys[2], (type_vocab, hidden), jnp.float32),
        "emb_ln_g": jnp.ones((hidden,), jnp.float32),
        "emb_ln_b": jnp.zeros((hidden,), jnp.float32),
        "layers": [],
    }
    for l in range(n_layers):
        lk = jax.random.split(keys[3 + l], 6)
        wq = init(lk[0], (hidden, hidden))
        wk = init(lk[1], (hidden, hidden))
        wv = init(lk[2], (hidden, hidden))
        params["layers"].append({
            # fused q|k|v projection weight [H, 3H] (bf16) and bias [3H] (f32)
            "wqkv": jnp.concatenate([wq, wk, wv], axis=1),
            "bqkv": jnp.zeros((3 * hidden,), jnp.float32),
            "wo": init(lk[3], (hidden, hidden)),
            "bo": jnp.zeros((hidden,), jnp.float32),
            "attn_ln_g": jnp.ones((hidden,), jnp.float32),
            "attn_ln_b": jnp.zeros((hidden,), jnp.float32),
            "wi": init(lk[4], (hidden, intermediate)),
            "bi": jnp.zeros((intermediate,), jnp.float32),
            "wo2": init(lk[5], (intermediate, hidden)),
            "bo2": jnp.zeros((hidden,), jnp.float32),
            "ffn_ln_g": jnp.ones((hidden,), jnp.float32),
            "ffn_ln_b": jnp.zeros((hidden,), jnp.float32),
        })
    return params


def bert_encoder_forward(params, x, attention_mask, n_heads):
    """Mirrors BertEncoder.forward: returns last_hidden_state [B, S, H] (f32)."""
    B, S = x.shape
    H = params["word_emb"].shape[1]
    Dh = H // n_heads
    scale = 1.0 / math.sqrt(Dh)
    M = B * S

    # --- embeddings (gather kept in plain JAX glue; frozen eval mode -> no dropout)
    emb = (params["word_emb"][x]
           + params["pos_emb"][jnp.arange(S)][None, :, :]
           + params["type_emb"][0][None, None, :])                       # [B,S,H] f32
    h = layer_norm(emb.reshape(M, H), params["emb_ln_g"], params["emb_ln_b"])  # f32

    # --- extended additive attention mask: (1 - mask) * -10000, shared across heads
    mask_add = (1.0 - attention_mask.astype(jnp.float32))[:, None, :] * -10000.0  # [B,1,S]

    for layer in params["layers"]:
        # --- self-attention block (fused QKV GEMM; BlockSpec-addressable head layout)
        qkv = linear(h, layer["wqkv"], layer["bqkv"])                    # [M, 3H] bf16
        # [M,3H] -> [3, B, NH, S, Dh]: one XLA transpose producing head-major q/k/v so
        # the attention kernel never slices heads along the lane dim.
        qkv_t = qkv.reshape(B, S, 3, n_heads, Dh).transpose(2, 0, 3, 1, 4)
        ctx = attention(qkv_t[0], qkv_t[1], qkv_t[2], mask_add, scale)   # [B,NH,S,Dh]
        ctx = ctx.transpose(0, 2, 1, 3).reshape(M, H)                    # head merge
        h = proj_add_layer_norm(ctx, layer["wo"], layer["bo"],
                                h, layer["attn_ln_g"], layer["attn_ln_b"])  # f32

        # --- feed-forward block (up + GELU + down + residual + LN, one kernel)
        h = ffn_add_layer_norm(h, layer["wi"], layer["bi"],
                               layer["wo2"], layer["bo2"],
                               layer["ffn_ln_g"], layer["ffn_ln_b"])     # f32

    return h.reshape(B, S, H)


# ---------------------------------------------------------------------------
# Demo
# ---------------------------------------------------------------------------

if __name__ == "__main__":
    B, S, H, NH, L, I, V = 2, 8, 32, 4, 2, 64, 50

    key = jax.random.PRNGKey(0)
    pkey, xkey = jax.random.split(key)

    params = init_params(pkey, vocab_size=V, hidden=H, n_layers=L,
                         intermediate=I, max_pos=S)

    x = jax.random.randint(xkey, (B, S), 0, V, dtype=jnp.int32)          # token ids
    attention_mask = jnp.array([[1, 1, 1, 1, 1, 1, 1, 1],
                                [1, 1, 1, 1, 1, 1, 0, 0]], dtype=jnp.int32)

    out = bert_encoder_forward(params, x, attention_mask, n_heads=NH)
    out = jax.block_until_ready(out)

    assert out.shape == (B, S, H)
    assert bool(jnp.all(jnp.isfinite(out)))
    print("KERNEL_OK")
</pallas_src>

<mosaic_0001>
module attributes {stable_mosaic.version = 11 : i64} {
  func.func @_layernorm_kernel(%arg0: i32, %arg1: memref<16x32xf32, #tpu.memory_space<vmem>>, %arg2: memref<1x32xf32, #tpu.memory_space<vmem>>, %arg3: memref<1x32xf32, #tpu.memory_space<vmem>>, %arg4: memref<16x32xf32, #tpu.memory_space<vmem>>) attributes {dimension_semantics = [#tpu.dimension_semantics<parallel>], iteration_bounds = array<i64: 1>, scalar_prefetch = 0 : i64, scratch_operands = 0 : i64, tpu.core_type = #tpu.core_type<tc>, window_params = [{transform_indices = @transform_0, window_bounds = array<i64: 16, 32>}, {pipeline_mode = #tpu.pipeline_mode<synchronous>, transform_indices = @transform_1, window_bounds = array<i64: 1, 32>}, {pipeline_mode = #tpu.pipeline_mode<synchronous>, transform_indices = @transform_2, window_bounds = array<i64: 1, 32>}, {transform_indices = @transform_3, window_bounds = array<i64: 16, 32>}]} {
    %c0 = arith.constant 0 : index
    %c0_0 = arith.constant 0 : index
    %0 = vector.load %arg1[%c0, %c0_0] : memref<16x32xf32, #tpu.memory_space<vmem>>, vector<16x32xf32>
    %cst = arith.constant dense<0.000000e+00> : vector<16xf32>
    %1 = vector.multi_reduction <add>, %0, %cst [1] : vector<16x32xf32> to vector<16xf32>
    %2 = vector.shape_cast %1 : vector<16xf32> to vector<16x1xf32>
    %cst_1 = arith.constant 3.200000e+01 : f32
    %3 = vector.broadcast %cst_1 : f32 to vector<16x1xf32>
    %4 = arith.divf %2, %3 : vector<16x1xf32>
    %5 = vector.broadcast %4 : vector<16x1xf32> to vector<16x32xf32>
    %6 = arith.subf %0, %5 : vector<16x32xf32>
    %7 = arith.mulf %6, %6 : vector<16x32xf32>
    %cst_2 = arith.constant dense<0.000000e+00> : vector<16xf32>
    %8 = vector.multi_reduction <add>, %7, %cst_2 [1] : vector<16x32xf32> to vector<16xf32>
    %9 = vector.shape_cast %8 : vector<16xf32> to vector<16x1xf32>
    %cst_3 = arith.constant 3.200000e+01 : f32
    %10 = vector.broadcast %cst_3 : f32 to vector<16x1xf32>
    %11 = arith.divf %9, %10 : vector<16x1xf32>
    %12 = vector.broadcast %4 : vector<16x1xf32> to vector<16x32xf32>
    %13 = arith.subf %0, %12 : vector<16x32xf32>
    %cst_4 = arith.constant 9.99999996E-13 : f32
    %14 = vector.broadcast %cst_4 : f32 to vector<16x1xf32>
    %15 = arith.addf %11, %14 : vector<16x1xf32>
    %16 = math.rsqrt %15 : vector<16x1xf32>
    %17 = vector.broadcast %16 : vector<16x1xf32> to vector<16x32xf32>
    %18 = arith.mulf %13, %17 : vector<16x32xf32>
    %c0_5 = arith.constant 0 : index
    %c0_6 = arith.constant 0 : index
    %19 = vector.load %arg2[%c0_5, %c0_6] : memref<1x32xf32, #tpu.memory_space<vmem>>, vector<1x32xf32>
    %20 = vector.broadcast %19 : vector<1x32xf32> to vector<16x32xf32>
    %21 = arith.mulf %18, %20 : vector<16x32xf32>
    %c0_7 = arith.constant 0 : index
    %c0_8 = arith.constant 0 : index
    %22 = vector.load %arg3[%c0_7, %c0_8] : memref<1x32xf32, #tpu.memory_space<vmem>>, vector<1x32xf32>
    %23 = vector.broadcast %22 : vector<1x32xf32> to vector<16x32xf32>
    %24 = arith.addf %21, %23 : vector<16x32xf32>
    %c0_9 = arith.constant 0 : index
    %c0_10 = arith.constant 0 : index
    %25 = vector.load %arg4[%c0_9, %c0_10] : memref<16x32xf32, #tpu.memory_space<vmem>>, vector<16x32xf32>
    tpu.vector_store %arg4[%c0_9, %c0_10], %24 {strides = array<i32>} : memref<16x32xf32, #tpu.memory_space<vmem>>, vector<16x32xf32>,
    return
  }
  func.func @transform_0(%arg0: i32) -> (i32, i32) {
    %c0_i32 = arith.constant 0 : i32
    %c0_i32_0 = arith.constant 0 : i32
    return %arg0, %c0_i32 : i32, i32
  }
  func.func @transform_1(%arg0: i32) -> (i32, i32) {
    %c0_i32 = arith.constant 0 : i32
    %c0_i32_0 = arith.constant 0 : i32
    %c0_i32_1 = arith.constant 0 : i32
    return %c0_i32, %c0_i32_0 : i32, i32
  }
  func.func @transform_2(%arg0: i32) -> (i32, i32) {
    %c0_i32 = arith.constant 0 : i32
    %c0_i32_0 = arith.constant 0 : i32
    %c0_i32_1 = arith.constant 0 : i32
    return %c0_i32, %c0_i32_0 : i32, i32
  }
  func.func @transform_3(%arg0: i32) -> (i32, i32) {
    %c0_i32 = arith.constant 0 : i32
    %c0_i32_0 = arith.constant 0 : i32
    return %arg0, %c0_i32 : i32, i32
  }
}

</mosaic_0001>

<llo_original>
// kernel: tpu_custom_call.1
$region0: #{tpu_custom_call.1}
  #allocation0 [shape = 'u32[]', space=smem, size = 0x4, offset = 0x4, fixed_abs, tag = 'smem constant byte address 0x4 - core index']
  #allocation1 [shape = 'u32[144,128]{1,0:T(1,128)}', space=vmem, size = 0x12000, scoped, tag = 'internal scratch']
  %s0 = inlined_call_operand.hbm [shape: f32[16,32], index: 0, kind: input, shape index: {}]
  %s1 = inlined_call_operand.vmem [shape: f32[1,32], index: 1, kind: input, shape index: {}]
  %s2 = inlined_call_operand.vmem [shape: f32[1,32], index: 2, kind: input, shape index: {}]
  %s3 = inlined_call_operand.hbm [shape: f32[16,32], index: 3, kind: output, shape index: {}]
  %s4 = sld [smem:[#allocation0]]
  $region26: #{tpu_custom_call.1} parent=0
    _
  %s6 = ssub.s32 1, %s4
  %s7 = scalar_select 0, %s6, %s4
  $region1: #{tpu_custom_call.1} parent=0
    #allocation2 [shape = 'u8[8192]{0}', space=vmem, size = 0x2000, scoped, tag = 'input window, operand 0, single buffered']
    #allocation3 [shape = 's32[1]{0}', space=sflag, size = 0x4, scoped, tag = 'scoped memory for tpu_custom_call.1']
    #allocation4 [shape = 's32[1]{0}', space=sflag, size = 0x4, scoped, tag = 'scoped memory for tpu_custom_call.1']
    #allocation5 [shape = 'u8[8192]{0}', space=vmem, size = 0x2000, scoped, tag = 'output window, operand 0, single buffered']
    %8 = vsyncpa [#allocation3], 0
    %9 = vsyncpa [#allocation4], 0
    // Predicated region
    $region2: #{tpu_custom_call.1} parent=1 // pred_check
      _
    $region3: #{tpu_custom_call.1} parent=1 // pred_check_branch
      %11 = sbr.rel (0) target = $region5
    $region4: #{tpu_custom_call.1} parent=1 // pred_region
      %s13 = ssub.s32 256, 256
      %14 = vsyncadd [#allocation3], %s13
      %s15 = sshll.u32 [#allocation2], 4
      %s16 = int_to_ptr.vmem [resolvable:$true] %s15
      %21 = dma.hbm_to_vmem [thread:$0]  %s0, 256, %s16, [#allocation3], 128, 128, 8
    $region5: #{tpu_custom_call.1} parent=1 // pred_fallthru
      _
    // Predicated region
    $region6: #{tpu_custom_call.1} parent=1 // pred_check
      _
    $region7: #{tpu_custom_call.1} parent=1 // pred_check_branch
      %23 = sbr.rel (0) target = $region9
    $region8: #{tpu_custom_call.1} parent=1 // pred_region
      _
    $region9: #{tpu_custom_call.1} parent=1 // pred_fallthru
      _
    // Predicated region
    $region10: #{tpu_custom_call.1} parent=1 // pred_check
      _
    $region11: #{tpu_custom_call.1} parent=1 // pred_check_branch
      %25 = sbr.rel (0) target = $region13
    $region12: #{tpu_custom_call.1} parent=1 // pred_region
      _
    $region13: #{tpu_custom_call.1} parent=1 // pred_fallthru
      _
    // Predicated region
    $region14: #{tpu_custom_call.1} parent=1 // pred_check
      _
    $region15: #{tpu_custom_call.1} parent=1 // pred_check_branch
      %27 = sbr.rel (0) target = $region17
    $region16: #{tpu_custom_call.1} parent=1 // pred_region
      %28 = dma.done [#allocation3], 256
    $region17: #{tpu_custom_call.1} parent=1 // pred_fallthru
      _
    %v29 = vld [vmem:[#allocation2] sm:$0xff]
    %v30 = vld [vmem:[#allocation2 + $0x8] sm:$0xff]
    %vm31 = vcmask 261120
    %v32 = vsel %vm31, %v29, 0.0
    %33 = vadd.xlane.f32.xlu0 %v32
    %v34 = vpop.xlane.xlu0 %33
    %v35 = vsel %vm31, %v30, 0.0
    %36 = vadd.xlane.f32.xlu0 %v35
    %v37 = vpop.xlane.xlu0 %36
    %v38 = vrcp.pop 32.0
    %v39 = vmul.f32 %v34, %v38
    %v40 = vmul.f32 %v37, %v38
    %v41 = vsub.f32 %v29, %v39
    %v42 = vsub.f32 %v30, %v40
    %v43 = vmul.f32 %v41, %v41
    %v44 = vmul.f32 %v42, %v42
    %v45 = vsel %vm31, %v43, 0.0
    %46 = vadd.xlane.f32.xlu0 %v45
    %v47 = vpop.xlane.xlu0 %46
    %v48 = vsel %vm31, %v44, 0.0
    %49 = vadd.xlane.f32.xlu0 %v48
    %v50 = vpop.xlane.xlu0 %49
    %v51 = vmul.f32 %v47, %v38
    %v52 = vmul.f32 %v50, %v38
    %v53 = vadd.f32 %v51, 1e-12
    %v54 = vadd.f32 %v52, 1e-12
    %v55 = vrsqrt.pop %v53
    %v56 = vrsqrt.pop %v54
    %v57 = vmul.f32 %v41, %v55
    %v58 = vmul.f32 %v42, %v56
    %v59 = vld [vmem:[%s1] sm:$0x1]
    %v61 = vlaneseq
    %v62 = vshrl.u32 %v61, 7
    %v63 = vsub.s32 0, %v62
    %v64 = vrot.slane %v59, %v63
    %v66 = vmul.f32 %v57, %v64
    %v67 = vmul.f32 %v58, %v64
    %v68 = vld [vmem:[%s2] sm:$0x1]
    %v70 = vlaneseq
    %v71 = vshrl.u32 %v70, 7
    %v72 = vsub.s32 0, %v71
    %v73 = vrot.slane %v68, %v72
    %v75 = vadd.f32 %v66, %v73
    %v76 = vadd.f32 %v67, %v73
    %77 = vst.msk [vmem:[#allocation5] sm:$0xff] %vm31, %v75
    %78 = vst.msk [vmem:[#allocation5 + $0x8] sm:$0xff] %vm31, %v76
    // Predicated region
    $region18: #{tpu_custom_call.1} parent=1 // pred_check
      _
    $region19: #{tpu_custom_call.1} parent=1 // pred_check_branch
      %80 = sbr.rel (0) target = $region21
    $region20: #{tpu_custom_call.1} parent=1 // pred_region
      %s82 = ssub.s32 256, 256
      %83 = vsyncadd [#allocation4], %s82
      %s84 = sshll.u32 [#allocation5], 4
      %s85 = int_to_ptr.vmem [resolvable:$true] %s84
      %90 = dma.vmem_to_hbm [thread:$0]  %s85, 256, %s3, [#allocation4], 128, 128, 8
    $region21: #{tpu_custom_call.1} parent=1 // pred_fallthru
      _
    // Predicated region
    $region22: #{tpu_custom_call.1} parent=1 // pred_check
      _
    $region23: #{tpu_custom_call.1} parent=1 // pred_check_branch
      %92 = sbr.rel (0) target = $region25
    $region24: #{tpu_custom_call.1} parent=1 // pred_region
      %93 = dma.done [#allocation4], 256
    $region25: #{tpu_custom_call.1} parent=1 // pred_fallthru
      _
    %94 = vsyncpa [#allocation3], 1
    %95 = vsyncpa [#allocation4], 1

</llo_original>
